<compile_context>
chip_gen: v6e
topology: v6e:2x2x1
jax: 0.10.0
libtpu: 0.0.40
codegen_flags: <defaults>
</compile_context>

<pallas_src>
import jax
import jax.numpy as jnp
from jax import lax
from jax.experimental import pallas as pl
from jax.experimental.pallas import tpu as pltpu

EPS = 1e-5                       # torch.nn.BatchNorm1d default eps
TILE_B = 2048                    # default batch tile (multiple of 256); adjusted per call
VMEM_BUDGET = 40 * 1024 * 1024   # conservative vs. v7x's 64 MiB physical VMEM


def nhlnet_kernel(x_ref, w1_ref, b1_ref, w2_ref, b2_ref, w3_ref, b3_ref, o_ref):
    # x tile: (TB, F) in the caller's dtype; cast to bf16 on the VPU (no host pass).
    xb = x_ref[...].astype(jnp.bfloat16)

    # fc1 (+ folded bn1) -> relu. NT contraction (H1, F) . (TB, F)^T -> (H1, TB):
    # hidden dim on sublanes/result-M, batch on lanes/result-N. Mosaic performs the
    # RHS relayout on the XLU (separate issue slot from the MXU pushes).
    h = lax.dot_general(w1_ref[...], xb, (((1,), (1,)), ((), ())),
                        preferred_element_type=jnp.float32)
    h = jnp.maximum(h + b1_ref[...], 0.0)              # dropout = identity in eval

    # fc2 (+ folded bn2) -> relu: (H2, H1) @ (H1, TB) -> (H2, TB), plain NN matmul.
    h = jnp.dot(w2_ref[...], h.astype(jnp.bfloat16),
                preferred_element_type=jnp.float32)
    h = jnp.maximum(h + b2_ref[...], 0.0)

    # fc3 -> sigmoid: (8, H2) @ (H2, TB) -> (8, TB); only row 0 is real (rows 1..7 are
    # zero padding to the 8-sublane granule). Batch already sits on lanes, so the store
    # is a lane-dense (1, TB) slab.
    z = jnp.dot(w3_ref[...], h.astype(jnp.bfloat16),
                preferred_element_type=jnp.float32)
    z = z[0:1, :] + b3_ref[...]
    o_ref[...] = 1.0 / (1.0 + jnp.exp(-z))              # sigmoid, f32


def _cdiv(a, b):
    return -(-a // b)


def _round_up(n, m):
    return _cdiv(n, m) * m


def _fold_bn(w, b, gamma, beta, mean, var):
    """Fold inference-mode BatchNorm1d into the preceding Linear (exact, f32)."""
    scale = gamma * lax.rsqrt(var + EPS)                 # (1, out)
    return w * scale, (b - mean) * scale + beta


def _vmem_estimate(tb, feat, h1, h2, x_itemsize):
    x_buf = 2 * tb * feat * x_itemsize                              # double-buffered x tile
    w_buf = (h1 * feat + h2 * h1 + 8 * h2) * 2 + (h1 + h2 + 1) * 4  # bf16 weights + f32 biases
    act = tb * (h1 + h2) * 6 + tb * 8 * 4 + 2 * tb * 4              # f32+bf16 temporaries + out
    return x_buf + w_buf + act


def _pick_tile_b(batch, feat, h1, h2, x_itemsize, requested):
    if batch < requested:
        # Small batch: one tile rounded to sublane granularity (no 64x padded-row waste).
        return max(_round_up(batch, 8), 8)
    tb = requested
    # Shrink until double-buffered x + activations fit the VMEM budget (v7x: 64 MiB).
    while tb > 256 and _vmem_estimate(tb, feat, h1, h2, x_itemsize) > VMEM_BUDGET:
        tb //= 2
    # Prefer an even number of batch tiles so v7x's two TensorCores stay balanced.
    nt = _cdiv(batch, tb)
    if nt > 1 and nt % 2 == 1:
        alt = _round_up(_cdiv(batch, nt + 1), 256)
        if 256 <= alt <= tb:
            tb = alt
    return tb


def nhlnet_forward(x, params, *, tile_b=TILE_B):
    """x: (B, n_features). params: dict from init_params. Returns (B, 1) f32.

    Eval-mode semantics: dropout = identity, BatchNorm uses running stats
    (folded exactly into the linear layers on the host).
    """
    B, F = x.shape
    H1 = params["w1"].shape[1]
    H2 = params["w2"].shape[1]

    # ---- host-side weight prep (tiny, one-time; no pass over x) ----
    w1, b1 = _fold_bn(params["w1"], params["b1"], params["g1"], params["be1"],
                      params["m1"], params["v1"])
    w2, b2 = _fold_bn(params["w2"], params["b2"], params["g2"], params["be2"],
                      params["m2"], params["v2"])
    w1t = w1.T.astype(jnp.bfloat16)                      # (H1, F)  bf16, BN folded
    w2t = w2.T.astype(jnp.bfloat16)                      # (H2, H1) bf16, BN folded
    w3r = jnp.zeros((8, H2), jnp.float32).at[0, :].set(params["w3"][:, 0])
    w3t = w3r.astype(jnp.bfloat16)                       # (8, H2)  bf16, rows 1..7 zero
    b1c = b1.T                                           # (H1, 1) f32 (per-sublane bias)
    b2c = b2.T                                           # (H2, 1) f32
    b3 = params["b3"]                                    # (1, 1)  f32

    tb = _pick_tile_b(B, F, H1, H2, x.dtype.itemsize, tile_b)
    num_tiles = _cdiv(B, tb)
    b_pad = num_tiles * tb                               # only the (tiny) output is padded

    flops = 2 * B * (F * H1 + H1 * H2 + H2)
    bytes_accessed = (B * F * x.dtype.itemsize                       # x read directly
                      + (H1 * F + H1 * H2 + 8 * H2) * 2              # bf16 weights
                      + (H1 + H2 + 1) * 4                            # f32 biases
                      + B * 4)                                       # output
    vmem_limit = int(min(48 * 1024 * 1024,
                         max(16 * 1024 * 1024,
                             2 * _vmem_estimate(tb, F, H1, H2, x.dtype.itemsize))))

    out = pl.pallas_call(
        nhlnet_kernel,
        out_shape=jax.ShapeDtypeStruct((1, b_pad), jnp.float32),
        grid=(num_tiles,),
        in_specs=[
            pl.BlockSpec((tb, F),  lambda i: (i, 0)),    # x: batch-tiled (ragged last tile OK)
            pl.BlockSpec((H1, F),  lambda i: (0, 0)),    # W1^T (BN folded), VMEM-resident
            pl.BlockSpec((H1, 1),  lambda i: (0, 0)),    # b1 column
            pl.BlockSpec((H2, H1), lambda i: (0, 0)),    # W2^T (BN folded)
            pl.BlockSpec((H2, 1),  lambda i: (0, 0)),    # b2 column
            pl.BlockSpec((8, H2),  lambda i: (0, 0)),    # w3 row, zero-padded to 8 sublanes
            pl.BlockSpec((1, 1),   lambda i: (0, 0)),    # b3
        ],
        out_specs=pl.BlockSpec((1, tb), lambda i: (0, i)),
        compiler_params=pltpu.CompilerParams(
            dimension_semantics=("parallel",),
            vmem_limit_bytes=vmem_limit),
        cost_estimate=pl.CostEstimate(flops=flops, transcendentals=B,
                                      bytes_accessed=bytes_accessed),
    )(x, w1t, b1c, w2t, b2c, w3t, b3)

    # Lane-dense (1, b_pad) -> (B, 1); drop padded lanes (garbage from ragged tiles
    # only ever lands in these discarded positions).
    return out[0, :B].reshape(B, 1)


def init_params(key, n_features):
    """Deterministic synthetic parameters matching NHLnetBinary.__init__ shapes."""
    ks = jax.random.split(key, 8)
    p = {}
    # Linear layers stored as (in, out); the math is x @ W (+ b).
    p["w1"] = jax.random.normal(ks[0], (n_features, 100), jnp.float32) * 0.1
    p["b1"] = jax.random.normal(ks[1], (1, 100), jnp.float32) * 0.1
    p["w2"] = jax.random.normal(ks[2], (100, 50), jnp.float32) * 0.1
    p["b2"] = jax.random.normal(ks[3], (1, 50), jnp.float32) * 0.1
    p["w3"] = jax.random.normal(ks[4], (50, 1), jnp.float32) * 0.1
    p["b3"] = jax.random.normal(ks[5], (1, 1), jnp.float32) * 0.1
    # BatchNorm1d(100) / BatchNorm1d(50): gamma, beta, running_mean, running_var.
    p["g1"] = jnp.ones((1, 100), jnp.float32) * 1.1
    p["be1"] = jnp.full((1, 100), 0.05, jnp.float32)
    p["m1"] = jax.random.normal(ks[6], (1, 100), jnp.float32) * 0.2
    p["v1"] = jnp.ones((1, 100), jnp.float32) * 0.9
    p["g2"] = jnp.ones((1, 50), jnp.float32) * 0.95
    p["be2"] = jnp.full((1, 50), -0.02, jnp.float32)
    p["m2"] = jax.random.normal(ks[7], (1, 50), jnp.float32) * 0.2
    p["v2"] = jnp.ones((1, 50), jnp.float32) * 1.05
    return p


def nhlnet_reference(x, p):
    """Pure-JAX f32 reference with PyTorch eval-mode semantics."""
    h = x @ p["w1"] + p["b1"]
    h = (h - p["m1"]) * (p["g1"] / jnp.sqrt(p["v1"] + EPS)) + p["be1"]
    h = jnp.maximum(h, 0.0)
    h = h @ p["w2"] + p["b2"]
    h = (h - p["m2"]) * (p["g2"] / jnp.sqrt(p["v2"] + EPS)) + p["be2"]
    h = jnp.maximum(h, 0.0)
    z = h @ p["w3"] + p["b3"]
    return jax.nn.sigmoid(z)


if __name__ == "__main__":
    B, n_features = 8, 32
    key = jax.random.PRNGKey(0)
    kx, kp = jax.random.split(key)
    x = jax.random.normal(kx, (B, n_features), jnp.float32)
    params = init_params(kp, n_features)

    out = jax.block_until_ready(nhlnet_forward(x, params))
    assert out.shape == (B, 1)

    ref = nhlnet_reference(x, params)
    max_err = float(jnp.max(jnp.abs(out - ref)))
    assert jnp.allclose(out, ref, atol=2e-2, rtol=2e-2), \
        f"mismatch vs reference (max abs err {max_err})"
    print("KERNEL_OK")
</pallas_src>

<mosaic_0001>
module attributes {stable_mosaic.version = 11 : i64} {
  func.func @nhlnet_kernel(%arg0: i32, %arg1: memref<8x32xf32, #tpu.memory_space<vmem>>, %arg2: memref<100x32xbf16, #tpu.memory_space<vmem>>, %arg3: memref<100x1xf32, #tpu.memory_space<vmem>>, %arg4: memref<50x100xbf16, #tpu.memory_space<vmem>>, %arg5: memref<50x1xf32, #tpu.memory_space<vmem>>, %arg6: memref<8x50xbf16, #tpu.memory_space<vmem>>, %arg7: memref<1x1xf32, #tpu.memory_space<vmem>>, %arg8: memref<1x8xf32, #tpu.memory_space<vmem>>) attributes {dimension_semantics = [#tpu.dimension_semantics<parallel>], iteration_bounds = array<i64: 1>, scalar_prefetch = 0 : i64, scratch_operands = 0 : i64, tpu.core_type = #tpu.core_type<tc>, window_params = [{transform_indices = @transform_0, window_bounds = array<i64: 8, 32>}, {pipeline_mode = #tpu.pipeline_mode<synchronous>, transform_indices = @transform_1, window_bounds = array<i64: 100, 32>}, {pipeline_mode = #tpu.pipeline_mode<synchronous>, transform_indices = @transform_2, window_bounds = array<i64: 100, 1>}, {pipeline_mode = #tpu.pipeline_mode<synchronous>, transform_indices = @transform_3, window_bounds = array<i64: 50, 100>}, {pipeline_mode = #tpu.pipeline_mode<synchronous>, transform_indices = @transform_4, window_bounds = array<i64: 50, 1>}, {pipeline_mode = #tpu.pipeline_mode<synchronous>, transform_indices = @transform_5, window_bounds = array<i64: 8, 50>}, {pipeline_mode = #tpu.pipeline_mode<synchronous>, transform_indices = @transform_6, window_bounds = array<i64: 1, 1>}, {transform_indices = @transform_7, window_bounds = array<i64: 1, 8>}]} {
    %c0 = arith.constant 0 : index
    %c0_0 = arith.constant 0 : index
    %0 = vector.load %arg1[%c0, %c0_0] : memref<8x32xf32, #tpu.memory_space<vmem>>, vector<8x32xf32>
    %1 = arith.truncf %0 : vector<8x32xf32> to vector<8x32xbf16>
    %c0_1 = arith.constant 0 : index
    %c0_2 = arith.constant 0 : index
    %2 = vector.load %arg2[%c0_1, %c0_2] : memref<100x32xbf16, #tpu.memory_space<vmem>>, vector<100x32xbf16>
    %cst = arith.constant dense<0.000000e+00> : vector<100x8xf32>
    %3 = tpu.matmul %2, %1, %cst {dimension_numbers = #tpu.dot_dimension_numbers<[1], [1], [0], [0], [0, 0, 1, 0], [], []>} : vector<100x32xbf16>, vector<8x32xbf16>, vector<100x8xf32> -> vector<100x8xf32>
    %c0_3 = arith.constant 0 : index
    %c0_4 = arith.constant 0 : index
    %4 = vector.load %arg3[%c0_3, %c0_4] : memref<100x1xf32, #tpu.memory_space<vmem>>, vector<100x1xf32>
    %5 = vector.broadcast %4 : vector<100x1xf32> to vector<100x8xf32>
    %6 = arith.addf %3, %5 : vector<100x8xf32>
    %cst_5 = arith.constant 0.000000e+00 : f32
    %7 = vector.broadcast %cst_5 : f32 to vector<100x8xf32>
    %8 = arith.maximumf %6, %7 : vector<100x8xf32>
    %c0_6 = arith.constant 0 : index
    %c0_7 = arith.constant 0 : index
    %9 = vector.load %arg4[%c0_6, %c0_7] : memref<50x100xbf16, #tpu.memory_space<vmem>>, vector<50x100xbf16>
    %10 = arith.truncf %8 : vector<100x8xf32> to vector<100x8xbf16>
    %cst_8 = arith.constant dense<0.000000e+00> : vector<50x8xf32>
    %11 = tpu.matmul %9, %10, %cst_8 {dimension_numbers = #tpu.dot_dimension_numbers<[1], [0], [0], [1], [0, 0, 1, 1], [], []>} : vector<50x100xbf16>, vector<100x8xbf16>, vector<50x8xf32> -> vector<50x8xf32>
    %c0_9 = arith.constant 0 : index
    %c0_10 = arith.constant 0 : index
    %12 = vector.load %arg5[%c0_9, %c0_10] : memref<50x1xf32, #tpu.memory_space<vmem>>, vector<50x1xf32>
    %13 = vector.broadcast %12 : vector<50x1xf32> to vector<50x8xf32>
    %14 = arith.addf %11, %13 : vector<50x8xf32>
    %cst_11 = arith.constant 0.000000e+00 : f32
    %15 = vector.broadcast %cst_11 : f32 to vector<50x8xf32>
    %16 = arith.maximumf %14, %15 : vector<50x8xf32>
    %c0_12 = arith.constant 0 : index
    %c0_13 = arith.constant 0 : index
    %17 = vector.load %arg6[%c0_12, %c0_13] : memref<8x50xbf16, #tpu.memory_space<vmem>>, vector<8x50xbf16>
    %18 = arith.truncf %16 : vector<50x8xf32> to vector<50x8xbf16>
    %cst_14 = arith.constant dense<0.000000e+00> : vector<8x8xf32>
    %19 = tpu.matmul %17, %18, %cst_14 {dimension_numbers = #tpu.dot_dimension_numbers<[1], [0], [0], [1], [0, 0, 1, 1], [], []>} : vector<8x50xbf16>, vector<50x8xbf16>, vector<8x8xf32> -> vector<8x8xf32>
    %20 = vector.extract_strided_slice %19 {offsets = [0, 0], sizes = [1, 8], strides = [1, 1]} : vector<8x8xf32> to vector<1x8xf32>
    %c0_15 = arith.constant 0 : index
    %c0_16 = arith.constant 0 : index
    %21 = vector.load %arg7[%c0_15, %c0_16] : memref<1x1xf32, #tpu.memory_space<vmem>>, vector<1x1xf32>
    %22 = vector.broadcast %21 : vector<1x1xf32> to vector<1x8xf32>
    %23 = arith.addf %20, %22 : vector<1x8xf32>
    %cst_17 = arith.constant 0.000000e+00 : f32
    %24 = vector.broadcast %cst_17 : f32 to vector<1x8xf32>
    %25 = arith.subf %24, %23 : vector<1x8xf32>
    %26 = math.exp %25 : vector<1x8xf32>
    %cst_18 = arith.constant 1.000000e+00 : f32
    %27 = vector.broadcast %cst_18 : f32 to vector<1x8xf32>
    %28 = arith.addf %27, %26 : vector<1x8xf32>
    %cst_19 = arith.constant 1.000000e+00 : f32
    %29 = vector.broadcast %cst_19 : f32 to vector<1x8xf32>
    %30 = arith.divf %29, %28 : vector<1x8xf32>
    %c0_20 = arith.constant 0 : index
    %c0_21 = arith.constant 0 : index
    %31 = vector.load %arg8[%c0_20, %c0_21] : memref<1x8xf32, #tpu.memory_space<vmem>>, vector<1x8xf32>
    tpu.vector_store %arg8[%c0_20, %c0_21], %30 {strides = array<i32>} : memref<1x8xf32, #tpu.memory_space<vmem>>, vector<1x8xf32>,
    return
  }
  func.func @transform_0(%arg0: i32) -> (i32, i32) {
    %c0_i32 = arith.constant 0 : i32
    %c0_i32_0 = arith.constant 0 : i32
    return %arg0, %c0_i32 : i32, i32
  }
  func.func @transform_1(%arg0: i32) -> (i32, i32) {
    %c0_i32 = arith.constant 0 : i32
    %c0_i32_0 = arith.constant 0 : i32
    %c0_i32_1 = arith.constant 0 : i32
    return %c0_i32, %c0_i32_0 : i32, i32
  }
  func.func @transform_2(%arg0: i32) -> (i32, i32) {
    %c0_i32 = arith.constant 0 : i32
    %c0_i32_0 = arith.constant 0 : i32
    %c0_i32_1 = arith.constant 0 : i32
    return %c0_i32, %c0_i32_0 : i32, i32
  }
  func.func @transform_3(%arg0: i32) -> (i32, i32) {
    %c0_i32 = arith.constant 0 : i32
    %c0_i32_0 = arith.constant 0 : i32
    %c0_i32_1 = arith.constant 0 : i32
    return %c0_i32, %c0_i32_0 : i32, i32
  }
  func.func @transform_4(%arg0: i32) -> (i32, i32) {
    %c0_i32 = arith.constant 0 : i32
    %c0_i32_0 = arith.constant 0 : i32
    %c0_i32_1 = arith.constant 0 : i32
    return %c0_i32, %c0_i32_0 : i32, i32
  }
  func.func @transform_5(%arg0: i32) -> (i32, i32) {
    %c0_i32 = arith.constant 0 : i32
    %c0_i32_0 = arith.constant 0 : i32
    %c0_i32_1 = arith.constant 0 : i32
    return %c0_i32, %c0_i32_0 : i32, i32
  }
  func.func @transform_6(%arg0: i32) -> (i32, i32) {
    %c0_i32 = arith.constant 0 : i32
    %c0_i32_0 = arith.constant 0 : i32
    %c0_i32_1 = arith.constant 0 : i32
    return %c0_i32, %c0_i32_0 : i32, i32
  }
  func.func @transform_7(%arg0: i32) -> (i32, i32) {
    %c0_i32 = arith.constant 0 : i32
    %c0_i32_0 = arith.constant 0 : i32
    return %c0_i32, %arg0 : i32, i32
  }
}

</mosaic_0001>

<llo_original>
// kernel: tpu_custom_call.1
$region0: #{tpu_custom_call.1}
  #allocation0 [shape = 'u32[]', space=smem, size = 0x4, offset = 0x4, fixed_abs, tag = 'smem constant byte address 0x4 - core index']
  #allocation1 [shape = 'u32[144,128]{1,0:T(1,128)}', space=vmem, size = 0x12000, scoped, tag = 'internal scratch']
  #allocation2 [shape = 'f32[1,1]{1,0:T(1,128)S(1)}', space=vmem, size = 0x200, scoped, tag = 'scoped memory for tpu_custom_call.1']
  %s0 = inlined_call_operand.vmem [shape: f32[8,32], index: 0, kind: input, shape index: {}]
  %s1 = inlined_call_operand.vmem [shape: bf16[100,32], index: 1, kind: input, shape index: {}]
  %s2 = inlined_call_operand.vmem [shape: f32[100,1], index: 2, kind: input, shape index: {}]
  %s3 = inlined_call_operand.vmem [shape: bf16[50,100], index: 3, kind: input, shape index: {}]
  %s4 = inlined_call_operand.vmem [shape: f32[50,1], index: 4, kind: input, shape index: {}]
  %s5 = inlined_call_operand.vmem [shape: bf16[8,50], index: 5, kind: input, shape index: {}]
  %s6 = inlined_call_operand.<no memory space> [shape: f32[1,1], index: 6, kind: input, shape index: {}]
  %s7 = inlined_call_operand.hbm [shape: f32[1,8], index: 7, kind: output, shape index: {}]
  %s8 = sld [smem:[#allocation0]]
  $region38: #{tpu_custom_call.1} parent=0
    _
  %s10 = ssub.s32 1, %s8
  %s11 = scalar_select 0, %s10, %s8
  %v12 = vstv %s6
  %13 = vst [vmem:[#allocation2] sm:$0x1] %v12
  $region1: #{tpu_custom_call.1} parent=0
    #allocation3 [shape = 'u8[512]{0}', space=vmem, size = 0x400, scoped, tag = 'output window, operand 0, single buffered']
    #allocation4 [shape = 's32[1]{0}', space=sflag, size = 0x4, scoped, tag = 'scoped memory for tpu_custom_call.1']
    %14 = vsyncpa [#allocation4], 0
    // Predicated region
    $region2: #{tpu_custom_call.1} parent=1 // pred_check
      _
    $region3: #{tpu_custom_call.1} parent=1 // pred_check_branch
      %16 = sbr.rel (0) target = $region5
    $region4: #{tpu_custom_call.1} parent=1 // pred_region
      _
    $region5: #{tpu_custom_call.1} parent=1 // pred_fallthru
      _
    // Predicated region
    $region6: #{tpu_custom_call.1} parent=1 // pred_check
      _
    $region7: #{tpu_custom_call.1} parent=1 // pred_check_branch
      %18 = sbr.rel (0) target = $region9
    $region8: #{tpu_custom_call.1} parent=1 // pred_region
      _
    $region9: #{tpu_custom_call.1} parent=1 // pred_fallthru
      _
    // Predicated region
    $region10: #{tpu_custom_call.1} parent=1 // pred_check
      _
    $region11: #{tpu_custom_call.1} parent=1 // pred_check_branch
      %20 = sbr.rel (0) target = $region13
    $region12: #{tpu_custom_call.1} parent=1 // pred_region
      _
    $region13: #{tpu_custom_call.1} parent=1 // pred_fallthru
      _
    // Predicated region
    $region14: #{tpu_custom_call.1} parent=1 // pred_check
      _
    $region15: #{tpu_custom_call.1} parent=1 // pred_check_branch
      %22 = sbr.rel (0) target = $region17
    $region16: #{tpu_custom_call.1} parent=1 // pred_region
      _
    $region17: #{tpu_custom_call.1} parent=1 // pred_fallthru
      _
    // Predicated region
    $region18: #{tpu_custom_call.1} parent=1 // pred_check
      _
    $region19: #{tpu_custom_call.1} parent=1 // pred_check_branch
      %24 = sbr.rel (0) target = $region21
    $region20: #{tpu_custom_call.1} parent=1 // pred_region
      _
    $region21: #{tpu_custom_call.1} parent=1 // pred_fallthru
      _
    // Predicated region
    $region22: #{tpu_custom_call.1} parent=1 // pred_check
      _
    $region23: #{tpu_custom_call.1} parent=1 // pred_check_branch
      %26 = sbr.rel (0) target = $region25
    $region24: #{tpu_custom_call.1} parent=1 // pred_region
      _
    $region25: #{tpu_custom_call.1} parent=1 // pred_fallthru
      _
    // Predicated region
    $region26: #{tpu_custom_call.1} parent=1 // pred_check
      _
    $region27: #{tpu_custom_call.1} parent=1 // pred_check_branch
      %28 = sbr.rel (0) target = $region29
    $region28: #{tpu_custom_call.1} parent=1 // pred_region
      _
    $region29: #{tpu_custom_call.1} parent=1 // pred_fallthru
      _
    %v30 = vld [vmem:[%s0] sm:$0xff]
    %v31 = vpack.c.bf16 %v30, %v30
    %v32 = vld [vmem:[%s1] sm:$0xf]
    %v33 = vld [vmem:[%s1 + $0x4] sm:$0xf]
    %v34 = vld [vmem:[%s1 + $0x8] sm:$0xf]
    %v35 = vld [vmem:[%s1 + $0xc] sm:$0xf]
    %v36 = vld [vmem:[%s1 + $0x10] sm:$0xf]
    %v37 = vld [vmem:[%s1 + $0x14] sm:$0xf]
    %v38 = vld [vmem:[%s1 + $0x18] sm:$0xf]
    %v39 = vld [vmem:[%s1 + $0x1c] sm:$0xf]
    %v40 = vld [vmem:[%s1 + $0x20] sm:$0xf]
    %v41 = vld [vmem:[%s1 + $0x24] sm:$0xf]
    %v42 = vld [vmem:[%s1 + $0x28] sm:$0xf]
    %v43 = vld [vmem:[%s1 + $0x2c] sm:$0xf]
    %v44 = vld [vmem:[%s1 + $0x30] sm:$0x3]
    %v45 = vld [vmem:[%s2] sm:$0xff]
    %v46 = vld [vmem:[%s2 + $0x8] sm:$0xff]
    %v47 = vld [vmem:[%s2 + $0x10] sm:$0xff]
    %v48 = vld [vmem:[%s2 + $0x18] sm:$0xff]
    %v49 = vld [vmem:[%s2 + $0x20] sm:$0xff]
    %v50 = vld [vmem:[%s2 + $0x28] sm:$0xff]
    %v51 = vld [vmem:[%s2 + $0x30] sm:$0xff]
    %v52 = vld [vmem:[%s2 + $0x38] sm:$0xff]
    %v53 = vld [vmem:[%s2 + $0x40] sm:$0xff]
    %v54 = vld [vmem:[%s2 + $0x48] sm:$0xff]
    %v55 = vld [vmem:[%s2 + $0x50] sm:$0xff]
    %v56 = vld [vmem:[%s2 + $0x58] sm:$0xff]
    %v57 = vld [vmem:[%s2 + $0x60] sm:$0xf]
    %59 = vset.pattern.permute.xlu0 0
    %60 = vperm.xlu0 %59, %v45
    %v61 = vpop.permute.xlu0 %60
    %64 = vset.pattern.permute.xlu0 0
    %65 = vperm.xlu0 %64, %v46
    %v66 = vpop.permute.xlu0 %65
    %69 = vset.pattern.permute.xlu0 0
    %70 = vperm.xlu0 %69, %v47
    %v71 = vpop.permute.xlu0 %70
    %74 = vset.pattern.permute.xlu0 0
    %75 = vperm.xlu0 %74, %v48
    %v76 = vpop.permute.xlu0 %75
    %79 = vset.pattern.permute.xlu0 0
    %80 = vperm.xlu0 %79, %v49
    %v81 = vpop.permute.xlu0 %80
    %84 = vset.pattern.permute.xlu0 0
    %85 = vperm.xlu0 %84, %v50
    %v86 = vpop.permute.xlu0 %85
    %89 = vset.pattern.permute.xlu0 0
    %90 = vperm.xlu0 %89, %v51
    %v91 = vpop.permute.xlu0 %90
    %94 = vset.pattern.permute.xlu0 0
    %95 = vperm.xlu0 %94, %v52
    %v96 = vpop.permute.xlu0 %95
    %99 = vset.pattern.permute.xlu0 0
    %100 = vperm.xlu0 %99, %v53
    %v101 = vpop.permute.xlu0 %100
    %104 = vset.pattern.permute.xlu0 0
    %105 = vperm.xlu0 %104, %v54
    %v106 = vpop.permute.xlu0 %105
    %109 = vset.pattern.permute.xlu0 0
    %110 = vperm.xlu0 %109, %v55
    %v111 = vpop.permute.xlu0 %110
    %114 = vset.pattern.permute.xlu0 0
    %115 = vperm.xlu0 %114, %v56
    %v116 = vpop.permute.xlu0 %115
    %119 = vset.pattern.permute.xlu0 0
    %120 = vperm.xlu0 %119, %v57
    %v121 = vpop.permute.xlu0 %120
    %v136 = vunpack.c.l.b16 %v32
    %v137 = vunpack.c.l.b16 %v33
    %v138 = vunpack.c.l.b16 %v34
    %v139 = vunpack.c.l.b16 %v35
    %v140 = vunpack.c.l.b16 %v36
    %v141 = vunpack.c.l.b16 %v37
    %v142 = vunpack.c.l.b16 %v38
    %v143 = vunpack.c.l.b16 %v39
    %v144 = vunpack.c.l.b16 %v40
    %v145 = vunpack.c.l.b16 %v41
    %v146 = vunpack.c.l.b16 %v42
    %v147 = vunpack.c.l.b16 %v43
    %v148 = vunpack.c.l.b16 %v44
    %v149 = vpack.c.b16 %v137, %v136
    %v150 = vpack.c.b16 %v139, %v138
    %v151 = vpack.c.b16 %v141, %v140
    %v152 = vpack.c.b16 %v143, %v142
    %v153 = vpack.c.b16 %v145, %v144
    %v154 = vpack.c.b16 %v147, %v146
    %v155 = vpack.c.b16 %v148, %v148
    %vm156 = vcmask 261120
    %v158 = vsel %vm156, %v149, 0
    %v161 = vsel %vm156, %v150, 0
    %v164 = vsel %vm156, %v151, 0
    %v167 = vsel %vm156, %v152, 0
    %v170 = vsel %vm156, %v153, 0
    %v173 = vsel %vm156, %v154, 0
    %v176 = vsel %vm156, %v155, 0
    %v179 = vsel %vm156, %v31, 0
    %181 = vmatprep.subr.bf16.mxu0 0
    %182 = vmatpush1.bf16.xpose.msra.mxu0 0
    %183 = vmatprep.subr.bf16.mxu0 0
    %184 = vmatpush1.bf16.xpose.msra.mxu0 0
    %185 = vmatprep.subr.bf16.mxu0 0
    %186 = vmatpush1.bf16.xpose.msra.mxu0 0
    %187 = vmatprep.subr.bf16.mxu0 0
    %188 = vmatpush1.bf16.xpose.msra.mxu0 0
    %189 = vmatprep.subr.bf16.mxu0 0
    %190 = vmatpush1.bf16.xpose.msra.mxu0 0
    %191 = vmatprep.subr.bf16.mxu0 0
    %192 = vmatpush1.bf16.xpose.msra.mxu0 0
    %193 = vmatprep.subr.bf16.mxu0 0
    %194 = vmatpush1.bf16.xpose.msra.mxu0 0
    %195 = vmatprep.subr.bf16.mxu0 0
    %196 = vmatpush1.bf16.xpose.msra.mxu0 %v179
    %197 = vmatprep.subr.bf16.mxu0 0
    %198 = vmatpush2.bf16.xpose.msra.mxu0 0
    %199 = vmatprep.subr.bf16.mxu0 0
    %200 = vmatpush2.bf16.xpose.msra.mxu0 0
    %201 = vmatprep.subr.bf16.mxu0 0
    %202 = vmatpush2.bf16.xpose.msra.mxu0 0
    %203 = vmatprep.subr.bf16.mxu0 0
    %204 = vmatpush2.bf16.xpose.msra.mxu0 0
    %205 = vmatprep.subr.bf16.mxu0 0
    %206 = vmatpush2.bf16.xpose.msra.mxu0 0
    %207 = vmatprep.subr.bf16.mxu0 0
    %208 = vmatpush2.bf16.xpose.msra.mxu0 0
    %209 = vmatprep.subr.bf16.mxu0 0
    %210 = vmatpush2.bf16.xpose.msra.mxu0 0
    %211 = vmatprep.subr.bf16.mxu0 0
    %212 = vmatpush2.bf16.xpose.msra.mxu0 0
    %213 = vmatprep.mubr.bf16.mxu0 0
    %214 = vmatmul.mubr.bf16.gmra.mxu0 %v158
    %v215 = vpop.f32.mrf.mxu0
    %v216 = vadd.f32 %v61, %v215
    %v217 = vpop.f32.mrf.mxu0
    %v218 = vpop.f32.mrf.mxu0
    %v219 = vadd.f32 %v66, %v218
    %v220 = vpop.f32.mrf.mxu0
    %221 = vmatprep.mubr.bf16.mxu0 0
    %222 = vmatmul.mubr.bf16.gmra.mxu0 %v161
    %v223 = vpop.f32.mrf.mxu0
    %v224 = vadd.f32 %v71, %v223
    %v225 = vpop.f32.mrf.mxu0
    %v226 = vpop.f32.mrf.mxu0
    %v227 = vadd.f32 %v76, %v226
    %v228 = vpop.f32.mrf.mxu0
    %229 = vmatprep.mubr.bf16.mxu0 0
    %230 = vmatmul.mubr.bf16.gmra.mxu0 %v164
    %v231 = vpop.f32.mrf.mxu0
    %v232 = vadd.f32 %v81, %v231
    %v233 = vpop.f32.mrf.mxu0
    %v234 = vpop.f32.mrf.mxu0
    %v235 = vadd.f32 %v86, %v234
    %v236 = vpop.f32.mrf.mxu0
    %237 = vmatprep.mubr.bf16.mxu0 0
    %238 = vmatmul.mubr.bf16.gmra.mxu0 %v167
    %v239 = vpop.f32.mrf.mxu0
    %v240 = vadd.f32 %v91, %v239
    %v241 = vpop.f32.mrf.mxu0
    %v242 = vpop.f32.mrf.mxu0
    %v243 = vadd.f32 %v96, %v242
    %v244 = vpop.f32.mrf.mxu0
    %245 = vmatprep.mubr.bf16.mxu0 0
    %246 = vmatmul.mubr.bf16.gmra.mxu0 %v170
    %v247 = vpop.f32.mrf.mxu0
    %v248 = vadd.f32 %v101, %v247
    %v249 = vpop.f32.mrf.mxu0
    %v250 = vpop.f32.mrf.mxu0
    %v251 = vadd.f32 %v106, %v250
    %v252 = vpop.f32.mrf.mxu0
    %253 = vmatprep.mubr.bf16.mxu0 0
    %254 = vmatmul.mubr.bf16.gmra.mxu0 %v173
    %v255 = vpop.f32.mrf.mxu0
    %v256 = vadd.f32 %v111, %v255
    %v257 = vpop.f32.mrf.mxu0
    %v258 = vpop.f32.mrf.mxu0
    %v259 = vadd.f32 %v116, %v258
    %v260 = vpop.f32.mrf.mxu0
    %261 = vmatprep.mubr.bf16.mxu0 0
    %262 = vmatmul.mubr.bf16.gmra.mxu0 %v176
    %v263 = vpop.f32.mrf.mxu0
    %v264 = vadd.f32 %v121, %v263
    %v265 = vpop.f32.mrf.mxu0
    %v266 = vpop.f32.mrf.mxu0
    %v267 = vpop.f32.mrf.mxu0
    %268 = vdwg.mxu0
    %v269 = vmax.f32 %v216, 0.0
    %v270 = vmax.f32 %v219, 0.0
    %v271 = vmax.f32 %v224, 0.0
    %v272 = vmax.f32 %v227, 0.0
    %v273 = vmax.f32 %v232, 0.0
    %v274 = vmax.f32 %v235, 0.0
    %v275 = vmax.f32 %v240, 0.0
    %v276 = vmax.f32 %v243, 0.0
    %v277 = vmax.f32 %v248, 0.0
    %v278 = vmax.f32 %v251, 0.0
    %v279 = vmax.f32 %v256, 0.0
    %v280 = vmax.f32 %v259, 0.0
    %v281 = vmax.f32 %v264, 0.0
    %v282 = vld [vmem:[%s3] sm:$0xf]
    %v283 = vld [vmem:[%s3 + $0x4] sm:$0xf]
    %v284 = vld [vmem:[%s3 + $0x8] sm:$0xf]
    %v285 = vld [vmem:[%s3 + $0xc] sm:$0xf]
    %v286 = vld [vmem:[%s3 + $0x10] sm:$0xf]
    %v287 = vld [vmem:[%s3 + $0x14] sm:$0xf]
    %v288 = vld [vmem:[%s3 + $0x18] sm:$0x1]
    %v289 = vpack.c.bf16 %v270, %v269
    %v290 = vpack.c.bf16 %v272, %v271
    %v291 = vpack.c.bf16 %v274, %v273
    %v292 = vpack.c.bf16 %v276, %v275
    %v293 = vpack.c.bf16 %v278, %v277
    %v294 = vpack.c.bf16 %v280, %v279
    %v295 = vpack.c.bf16 %v281, %v281
    %v296 = vld [vmem:[%s4] sm:$0xff]
    %v297 = vld [vmem:[%s4 + $0x8] sm:$0xff]
    %v298 = vld [vmem:[%s4 + $0x10] sm:$0xff]
    %v299 = vld [vmem:[%s4 + $0x18] sm:$0xff]
    %v300 = vld [vmem:[%s4 + $0x20] sm:$0xff]
    %v301 = vld [vmem:[%s4 + $0x28] sm:$0xff]
    %v302 = vld [vmem:[%s4 + $0x30] sm:$0x3]
    %304 = vset.pattern.permute.xlu0 0
    %305 = vperm.xlu0 %304, %v296
    %v306 = vpop.permute.xlu0 %305
    %309 = vset.pattern.permute.xlu0 0
    %310 = vperm.xlu0 %309, %v297
    %v311 = vpop.permute.xlu0 %310
    %314 = vset.pattern.permute.xlu0 0
    %315 = vperm.xlu0 %314, %v298
    %v316 = vpop.permute.xlu0 %315
    %319 = vset.pattern.permute.xlu0 0
    %320 = vperm.xlu0 %319, %v299
    %v321 = vpop.permute.xlu0 %320
    %324 = vset.pattern.permute.xlu0 0
    %325 = vperm.xlu0 %324, %v300
    %v326 = vpop.permute.xlu0 %325
    %329 = vset.pattern.permute.xlu0 0
    %330 = vperm.xlu0 %329, %v301
    %v331 = vpop.permute.xlu0 %330
    %334 = vset.pattern.permute.xlu0 0
    %335 = vperm.xlu0 %334, %v302
    %v336 = vpop.permute.xlu0 %335
    %v345 = vunpack.c.l.b16 %v282
    %v346 = vunpack.c.l.b16 %v283
    %v347 = vunpack.c.l.b16 %v284
    %v348 = vunpack.c.l.b16 %v285
    %v349 = vunpack.c.l.b16 %v286
    %v350 = vunpack.c.l.b16 %v287
    %v351 = vunpack.c.l.b16 %v288
    %v352 = vpack.c.b16 %v346, %v345
    %v353 = vpack.c.b16 %v348, %v347
    %v354 = vpack.c.b16 %v350, %v349
    %v355 = vpack.c.b16 %v351, %v351
    %vm356 = vcmask 818176
    %v358 = vsel %vm356, %v352, 0
    %v361 = vsel %vm356, %v353, 0
    %v364 = vsel %vm356, %v354, 0
    %v367 = vsel %vm356, %v355, 0
    %vm369 = vcmask 1041408
    %v371 = vsel %vm369, %v295, 0
    %373 = vmatprep.subr.bf16.mxu0 0
    %374 = vmatpush1.bf16.msra.mxu0 0
    %375 = vmatprep.subr.bf16.mxu0 0
    %376 = vmatpush1.bf16.msra.mxu0 %v371
    %377 = vmatprep.subr.bf16.mxu0 0
    %378 = vmatpush1.bf16.msra.mxu0 %v294
    %379 = vmatprep.subr.bf16.mxu0 0
    %380 = vmatpush1.bf16.msra.mxu0 %v293
    %381 = vmatprep.subr.bf16.mxu0 0
    %382 = vmatpush1.bf16.msra.mxu0 %v292
    %383 = vmatprep.subr.bf16.mxu0 0
    %384 = vmatpush1.bf16.msra.mxu0 %v291
    %385 = vmatprep.subr.bf16.mxu0 0
    %386 = vmatpush1.bf16.msra.mxu0 %v290
    %387 = vmatprep.subr.bf16.mxu0 0
    %388 = vmatpush1.bf16.msra.mxu0 %v289
    %389 = vmatprep.subr.bf16.mxu0 0
    %390 = vmatpush2.bf16.msra.mxu0 0
    %391 = vmatprep.subr.bf16.mxu0 0
    %392 = vmatpush2.bf16.msra.mxu0 0
    %393 = vmatprep.subr.bf16.mxu0 0
    %394 = vmatpush2.bf16.msra.mxu0 0
    %395 = vmatprep.subr.bf16.mxu0 0
    %396 = vmatpush2.bf16.msra.mxu0 0
    %397 = vmatprep.subr.bf16.mxu0 0
    %398 = vmatpush2.bf16.msra.mxu0 0
    %399 = vmatprep.subr.bf16.mxu0 0
    %400 = vmatpush2.bf16.msra.mxu0 0
    %401 = vmatprep.subr.bf16.mxu0 0
    %402 = vmatpush2.bf16.msra.mxu0 0
    %403 = vmatprep.subr.bf16.mxu0 0
    %404 = vmatpush2.bf16.msra.mxu0 0
    %405 = vmatprep.mubr.bf16.mxu0 0
    %406 = vmatmul.mubr.bf16.gmra.mxu0 %v358
    %v407 = vpop.f32.mrf.mxu0
    %v408 = vadd.f32 %v306, %v407
    %v409 = vpop.f32.mrf.mxu0
    %v410 = vpop.f32.mrf.mxu0
    %v411 = vadd.f32 %v311, %v410
    %v412 = vpop.f32.mrf.mxu0
    %413 = vmatprep.mubr.bf16.mxu0 0
    %414 = vmatmul.mubr.bf16.gmra.mxu0 %v361
    %v415 = vpop.f32.mrf.mxu0
    %v416 = vadd.f32 %v316, %v415
    %v417 = vpop.f32.mrf.mxu0
    %v418 = vpop.f32.mrf.mxu0
    %v419 = vadd.f32 %v321, %v418
    %v420 = vpop.f32.mrf.mxu0
    %421 = vmatprep.mubr.bf16.mxu0 0
    %422 = vmatmul.mubr.bf16.gmra.mxu0 %v364
    %v423 = vpop.f32.mrf.mxu0
    %v424 = vadd.f32 %v326, %v423
    %v425 = vpop.f32.mrf.mxu0
    %v426 = vpop.f32.mrf.mxu0
    %v427 = vadd.f32 %v331, %v426
    %v428 = vpop.f32.mrf.mxu0
    %429 = vmatprep.mubr.bf16.mxu0 0
    %430 = vmatmul.mubr.bf16.gmra.mxu0 %v367
    %v431 = vpop.f32.mrf.mxu0
    %v432 = vadd.f32 %v336, %v431
    %v433 = vpop.f32.mrf.mxu0
    %v434 = vpop.f32.mrf.mxu0
    %v435 = vpop.f32.mrf.mxu0
    %436 = vdwg.mxu0
    %v437 = vmax.f32 %v408, 0.0
    %v438 = vmax.f32 %v411, 0.0
    %v439 = vmax.f32 %v416, 0.0
    %v440 = vmax.f32 %v419, 0.0
    %v441 = vmax.f32 %v424, 0.0
    %v442 = vmax.f32 %v427, 0.0
    %v443 = vmax.f32 %v432, 0.0
    %v444 = vld [vmem:[%s5] sm:$0xf]
    %v445 = vpack.c.bf16 %v438, %v437
    %v446 = vpack.c.bf16 %v440, %v439
    %v447 = vpack.c.bf16 %v442, %v441
    %v448 = vpack.c.bf16 %v443, %v443
    %vm449 = vcmask 408576
    %v451 = vsel %vm449, %v444, 0
    %vm453 = vcmask 1040384
    %v455 = vsel %vm453, %v448, 0
    %457 = vmatprep.subr.bf16.mxu0 0
    %458 = vmatpush1.bf16.msra.mxu0 0
    %459 = vmatprep.subr.bf16.mxu0 0
    %460 = vmatpush1.bf16.msra.mxu0 0
    %461 = vmatprep.subr.bf16.mxu0 0
    %462 = vmatpush1.bf16.msra.mxu0 0
    %463 = vmatprep.subr.bf16.mxu0 0
    %464 = vmatpush1.bf16.msra.mxu0 0
    %465 = vmatprep.subr.bf16.mxu0 0
    %466 = vmatpush1.bf16.msra.mxu0 %v455
    %467 = vmatprep.subr.bf16.mxu0 0
    %468 = vmatpush1.bf16.msra.mxu0 %v447
    %469 = vmatprep.subr.bf16.mxu0 0
    %470 = vmatpush1.bf16.msra.mxu0 %v446
    %471 = vmatprep.subr.bf16.mxu0 0
    %472 = vmatpush1.bf16.msra.mxu0 %v445
    %473 = vmatprep.subr.bf16.mxu0 0
    %474 = vmatpush2.bf16.msra.mxu0 0
    %475 = vmatprep.subr.bf16.mxu0 0
    %476 = vmatpush2.bf16.msra.mxu0 0
    %477 = vmatprep.subr.bf16.mxu0 0
    %478 = vmatpush2.bf16.msra.mxu0 0
    %479 = vmatprep.subr.bf16.mxu0 0
    %480 = vmatpush2.bf16.msra.mxu0 0
    %481 = vmatprep.subr.bf16.mxu0 0
    %482 = vmatpush2.bf16.msra.mxu0 0
    %483 = vmatprep.subr.bf16.mxu0 0
    %484 = vmatpush2.bf16.msra.mxu0 0
    %485 = vmatprep.subr.bf16.mxu0 0
    %486 = vmatpush2.bf16.msra.mxu0 0
    %487 = vmatprep.subr.bf16.mxu0 0
    %488 = vmatpush2.bf16.msra.mxu0 0
    %489 = vmatprep.mubr.bf16.mxu0 0
    %490 = vmatmul.mubr.bf16.gmra.mxu0 %v451
    %v491 = vpop.f32.mrf.mxu0
    %v492 = vadd.f32 0.0, %v491
    %v493 = vpop.f32.mrf.mxu0
    %v494 = vpop.f32.mrf.mxu0
    %v495 = vpop.f32.mrf.mxu0
    %496 = vdwg.mxu0
    %v497 = vld [vmem:[#allocation2] sm:$0x1]
    %499 = vset.pattern.permute.xlu0 0
    %500 = vperm.xlu0 %499, %v497
    %v501 = vpop.permute.xlu0 %500
    %v503 = vlaneseq
    %v504 = vshrl.u32 %v503, 7
    %v505 = vsub.s32 0, %v504
    %v506 = vrot.slane %v501, %v505
    %v507 = vadd.f32 %v492, %v506
    %v508 = vsub.f32 0.0, %v507
    %v509 = vmul.f32 %v508, 1.442695
    %v510 = vpow.pop %v509
    %v511 = vadd.f32 %v510, 1.0
    %v512 = vrcp.pop %v511
    %v513 = vmul.f32 1.0, %v512
    %vm514 = vcmask 57344
    %515 = vst.msk [vmem:[#allocation3] sm:$0x1] %vm514, %v513
    // Predicated region
    $region30: #{tpu_custom_call.1} parent=1 // pred_check
      _
    $region31: #{tpu_custom_call.1} parent=1 // pred_check_branch
      %517 = sbr.rel (0) target = $region33
    $region32: #{tpu_custom_call.1} parent=1 // pred_region
      %s519 = ssub.s32 16, 16
      %520 = vsyncadd [#allocation4], %s519
      %s522 = sshll.u32 [#allocation3], 4
      %s523 = int_to_ptr.vmem [resolvable:$true] %s522
      %525 = dma.vmem_to_hbm [thread:$0]  %s523, 16, %s7, [#allocation4]
    $region33: #{tpu_custom_call.1} parent=1 // pred_fallthru
      _
    // Predicated region
    $region34: #{tpu_custom_call.1} parent=1 // pred_check
      _
    $region35: #{tpu_custom_call.1} parent=1 // pred_check_branch
      %527 = sbr.rel (0) target = $region37
    $region36: #{tpu_custom_call.1} parent=1 // pred_region
      %528 = dma.done [#allocation4], 16
    $region37: #{tpu_custom_call.1} parent=1 // pred_fallthru
      _
    %529 = vsyncpa [#allocation4], 1

</llo_original>
